<compile_context>
chip_gen: v6e
topology: v6e:2x2x1
jax: 0.10.0
libtpu: 0.0.40
codegen_flags: <defaults>
</compile_context>

<pallas_src>
import jax
import jax.numpy as jnp
from jax import lax
from jax.experimental import pallas as pl
from jax.experimental.pallas import tpu as pltpu

LN_EPS = 1e-5                      # torch.nn.LayerNorm default
_INV_SQRT2 = 0.7071067811865476    # exact-erf GELU (torch.nn.GELU default)


# ---------------------------------------------------------------------------
# Kernel
# ---------------------------------------------------------------------------
def _ffn_kernel(x_ref, g_ref, b_ref, w1_ref, b1_ref, w2_ref, b2_ref, o_ref,
                xn_ref, acc_ref):
    # x_ref : [TN, D] f32 row tile          g/b : [1, D] f32
    # w1_ref: [D, TH] bf16 chunk            b1  : [1, TH] f32 chunk
    # w2_ref: [TH, D] bf16 chunk            b2  : [1, D] f32
    # o_ref : [TN, D]                       xn_ref: [TN, D] bf16 scratch
    # acc_ref: [TN, D] f32 scratch accumulator
    k = pl.program_id(1)

    @pl.when(k == 0)
    def _():
        # LayerNorm over last dim (biased variance, like torch.nn.LayerNorm), f32 math.
        x = x_ref[...].astype(jnp.float32)
        mean = jnp.mean(x, axis=-1, keepdims=True)
        xc = x - mean
        var = jnp.mean(xc * xc, axis=-1, keepdims=True)
        inv = lax.rsqrt(var + LN_EPS)
        xn = xc * inv * g_ref[...].astype(jnp.float32) + b_ref[...].astype(jnp.float32)
        xn_ref[...] = xn.astype(jnp.bfloat16)          # cache for every H chunk
        acc_ref[...] = jnp.zeros_like(acc_ref)

    # Linear(dim -> hidden) chunk: bf16 MXU operands, f32 accumulation.
    h = jnp.dot(xn_ref[...], w1_ref[...], preferred_element_type=jnp.float32)
    h = h + b1_ref[...].astype(jnp.float32)

    # GELU (exact erf form), f32 elementwise -- applied per H chunk (elementwise => safe).
    h = 0.5 * h * (1.0 + lax.erf(h * jnp.float32(_INV_SQRT2)))

    # Dropout(p=0.0) is identity at inference.

    # Linear(hidden -> dim) chunk, accumulated into the persistent f32 output accumulator.
    acc_ref[...] += jnp.dot(h.astype(jnp.bfloat16), w2_ref[...],
                            preferred_element_type=jnp.float32)

    @pl.when(k == pl.num_programs(1) - 1)
    def _():
        o_ref[...] = (acc_ref[...] + b2_ref[...].astype(jnp.float32)).astype(o_ref.dtype)


# ---------------------------------------------------------------------------
# Wrapper helpers
# ---------------------------------------------------------------------------
def _round_up(n, m):
    return ((n + m - 1) // m) * m


def _pick_h_chunk(H, th_max):
    """Largest H chunk <= th_max that divides H exactly and keeps lane alignment.
    Exact division avoids ragged chunks along the reduction dim of the second matmul
    (ragged H chunks would read garbage that contaminates the accumulator)."""
    if H <= th_max or H % 128 != 0:
        return H
    hi = min(th_max, H)
    th = hi - (hi % 128)
    while th >= 128:
        if H % th == 0:
            return th
        th -= 128
    return H


def _const_spec(block_shape, index_map):
    """BlockSpec for a block whose index never changes: single-buffer it when supported."""
    if hasattr(pl, "Buffered"):
        try:
            return pl.BlockSpec(block_shape, index_map, pipeline_mode=pl.Buffered(1))
        except TypeError:
            pass
    return pl.BlockSpec(block_shape, index_map)


def _vmem_limit_bytes():
    """~75% of physical per-core VMEM, capped -- leaves headroom for compiler scratch.
    (v7x: 64 MiB -> 48 MiB; v5e/v6e: 128 MiB -> 96 MiB.)"""
    try:
        cap = int(pltpu.get_tpu_info().vmem_capacity_bytes)
    except Exception:
        cap = 64 * 1024 * 1024  # conservative fallback (v7x per-TC size)
    return min((cap * 3) // 4, 112 * 1024 * 1024)


def prepare_ffn_params(gamma, beta, w1, b1, w2, b2):
    """One-time parameter preparation (bf16 weight cast + bias reshape).
    Done at load time so the per-call path has no weight-convert HBM traffic."""
    D, H = w1.shape
    return dict(
        gamma=gamma.reshape(1, D).astype(jnp.float32),
        beta=beta.reshape(1, D).astype(jnp.float32),
        w1=w1.astype(jnp.bfloat16),
        b1=b1.reshape(1, H).astype(jnp.float32),
        w2=w2.astype(jnp.bfloat16),
        b2=b2.reshape(1, D).astype(jnp.float32),
    )


def feed_forward(x, params, *, tile_rows=512, hidden_chunk=2048):
    """x: [B, S, D]. params: output of prepare_ffn_params. Returns [B, S, D]."""
    B, S, D = x.shape
    H = params["w1"].shape[1]
    N = B * S
    x2 = x.reshape(N, D)

    # Row tile: multiple of 8 sublanes (256-aligned default for v6e/v7x MXU), capped by N.
    tn = min(tile_rows, _round_up(N, 8))
    tn = max(8, _round_up(tn, 8))
    th = _pick_h_chunk(H, hidden_chunk)

    grid = (pl.cdiv(N, tn), H // th)

    out = pl.pallas_call(
        _ffn_kernel,
        out_shape=jax.ShapeDtypeStruct((N, D), x.dtype),
        grid=grid,
        in_specs=[
            pl.BlockSpec((tn, D), lambda i, k: (i, 0)),    # x row tile (double-buffered)
            _const_spec((1, D), lambda i, k: (0, 0)),      # gamma (resident, 1 buffer)
            _const_spec((1, D), lambda i, k: (0, 0)),      # beta  (resident, 1 buffer)
            pl.BlockSpec((D, th), lambda i, k: (0, k)),    # w1 chunk (pipelined over k)
            pl.BlockSpec((1, th), lambda i, k: (0, k)),    # b1 chunk
            pl.BlockSpec((th, D), lambda i, k: (k, 0)),    # w2 chunk (pipelined over k)
            _const_spec((1, D), lambda i, k: (0, 0)),      # b2 (resident, 1 buffer)
        ],
        out_specs=pl.BlockSpec((tn, D), lambda i, k: (i, 0)),
        scratch_shapes=[
            pltpu.VMEM((tn, D), jnp.bfloat16),   # cached LayerNorm output
            pltpu.VMEM((tn, D), jnp.float32),    # output accumulator
        ],
        compiler_params=pltpu.CompilerParams(
            dimension_semantics=("parallel", "arbitrary"),
            vmem_limit_bytes=_vmem_limit_bytes(),
        ),
    )(x2, params["gamma"], params["beta"], params["w1"], params["b1"],
      params["w2"], params["b2"])
    return out.reshape(B, S, D)


# ---------------------------------------------------------------------------
# Pure-JAX f32 reference (matches the torch module exactly)
# ---------------------------------------------------------------------------
def _ffn_reference(x, gamma, beta, w1, b1, w2, b2):
    mean = jnp.mean(x, axis=-1, keepdims=True)
    var = jnp.mean((x - mean) ** 2, axis=-1, keepdims=True)
    xn = (x - mean) * lax.rsqrt(var + LN_EPS) * gamma + beta
    h = xn @ w1 + b1
    h = 0.5 * h * (1.0 + lax.erf(h / jnp.sqrt(2.0)))
    return h @ w2 + b2


if __name__ == "__main__":
    B, S, D, H = 2, 8, 32, 64

    key = jax.random.PRNGKey(0)
    kx, kw1, kb1, kw2, kb2 = jax.random.split(key, 5)

    x = jax.random.normal(kx, (B, S, D), dtype=jnp.float32)

    # LayerNorm params (torch default init: weight=1, bias=0)
    gamma = jnp.ones((D,), dtype=jnp.float32)
    beta = jnp.zeros((D,), dtype=jnp.float32)

    # Linear params (uniform init, same scale as torch's default)
    bound1 = 1.0 / jnp.sqrt(D)
    w1 = jax.random.uniform(kw1, (D, H), minval=-bound1, maxval=bound1, dtype=jnp.float32)
    b1 = jax.random.uniform(kb1, (H,), minval=-bound1, maxval=bound1, dtype=jnp.float32)
    bound2 = 1.0 / jnp.sqrt(H)
    w2 = jax.random.uniform(kw2, (H, D), minval=-bound2, maxval=bound2, dtype=jnp.float32)
    b2 = jax.random.uniform(kb2, (D,), minval=-bound2, maxval=bound2, dtype=jnp.float32)

    params = prepare_ffn_params(gamma, beta, w1, b1, w2, b2)   # one-time bf16 cast

    y = feed_forward(x, params)
    y = jax.block_until_ready(y)

    y_ref = _ffn_reference(x, gamma, beta, w1, b1, w2, b2)
    assert y.shape == (B, S, D)
    # bf16 MXU operands -> ~1e-2-level relative error vs the f32 reference.
    assert jnp.allclose(y, y_ref, atol=3e-2, rtol=3e-2), "mismatch vs reference"

    print("KERNEL_OK")
</pallas_src>

<mosaic_0001>
module attributes {stable_mosaic.version = 11 : i64} {
  func.func @_ffn_kernel(%arg0: i32, %arg1: i32, %arg2: memref<16x32xf32, #tpu.memory_space<vmem>>, %arg3: memref<1x32xf32, #tpu.memory_space<vmem>>, %arg4: memref<1x32xf32, #tpu.memory_space<vmem>>, %arg5: memref<32x64xbf16, #tpu.memory_space<vmem>>, %arg6: memref<1x64xf32, #tpu.memory_space<vmem>>, %arg7: memref<64x32xbf16, #tpu.memory_space<vmem>>, %arg8: memref<1x32xf32, #tpu.memory_space<vmem>>, %arg9: memref<16x32xf32, #tpu.memory_space<vmem>>, %arg10: memref<16x32xbf16, #tpu.memory_space<vmem>>, %arg11: memref<16x32xf32, #tpu.memory_space<vmem>>) attributes {dimension_semantics = [#tpu.dimension_semantics<parallel>, #tpu.dimension_semantics<arbitrary>], iteration_bounds = array<i64: 1, 1>, scalar_prefetch = 0 : i64, scratch_operands = 2 : i64, tpu.core_type = #tpu.core_type<tc>, window_params = [{transform_indices = @transform_0, window_bounds = array<i64: 16, 32>}, {pipeline_mode = #tpu.pipeline_mode<synchronous>, transform_indices = @transform_1, window_bounds = array<i64: 1, 32>}, {pipeline_mode = #tpu.pipeline_mode<synchronous>, transform_indices = @transform_2, window_bounds = array<i64: 1, 32>}, {transform_indices = @transform_3, window_bounds = array<i64: 32, 64>}, {transform_indices = @transform_4, window_bounds = array<i64: 1, 64>}, {transform_indices = @transform_5, window_bounds = array<i64: 64, 32>}, {pipeline_mode = #tpu.pipeline_mode<synchronous>, transform_indices = @transform_6, window_bounds = array<i64: 1, 32>}, {transform_indices = @transform_7, window_bounds = array<i64: 16, 32>}]} {
    %c0_i32 = arith.constant 0 : i32
    %0 = arith.cmpi eq, %arg1, %c0_i32 : i32
    %1 = arith.extui %0 : i1 to i32
    %c0_i32_0 = arith.constant 0 : i32
    %2 = arith.cmpi ne, %1, %c0_i32_0 : i32
    scf.if %2 {
      %c0_18 = arith.constant 0 : index
      %c0_19 = arith.constant 0 : index
      %26 = vector.load %arg2[%c0_18, %c0_19] : memref<16x32xf32, #tpu.memory_space<vmem>>, vector<16x32xf32>
      %cst_20 = arith.constant dense<0.000000e+00> : vector<16xf32>
      %27 = vector.multi_reduction <add>, %26, %cst_20 [1] : vector<16x32xf32> to vector<16xf32>
      %28 = vector.shape_cast %27 : vector<16xf32> to vector<16x1xf32>
      %cst_21 = arith.constant 3.200000e+01 : f32
      %29 = vector.broadcast %cst_21 : f32 to vector<16x1xf32>
      %30 = arith.divf %28, %29 : vector<16x1xf32>
      %31 = vector.broadcast %30 : vector<16x1xf32> to vector<16x32xf32>
      %32 = arith.subf %26, %31 : vector<16x32xf32>
      %33 = arith.mulf %32, %32 : vector<16x32xf32>
      %cst_22 = arith.constant dense<0.000000e+00> : vector<16xf32>
      %34 = vector.multi_reduction <add>, %33, %cst_22 [1] : vector<16x32xf32> to vector<16xf32>
      %35 = vector.shape_cast %34 : vector<16xf32> to vector<16x1xf32>
      %cst_23 = arith.constant 3.200000e+01 : f32
      %36 = vector.broadcast %cst_23 : f32 to vector<16x1xf32>
      %37 = arith.divf %35, %36 : vector<16x1xf32>
      %cst_24 = arith.constant 9.99999974E-6 : f32
      %38 = vector.broadcast %cst_24 : f32 to vector<16x1xf32>
      %39 = arith.addf %37, %38 : vector<16x1xf32>
      %40 = math.rsqrt %39 : vector<16x1xf32>
      %41 = vector.broadcast %40 : vector<16x1xf32> to vector<16x32xf32>
      %42 = arith.mulf %32, %41 : vector<16x32xf32>
      %c0_25 = arith.constant 0 : index
      %c0_26 = arith.constant 0 : index
      %43 = vector.load %arg3[%c0_25, %c0_26] : memref<1x32xf32, #tpu.memory_space<vmem>>, vector<1x32xf32>
      %44 = vector.broadcast %43 : vector<1x32xf32> to vector<16x32xf32>
      %45 = arith.mulf %42, %44 : vector<16x32xf32>
      %c0_27 = arith.constant 0 : index
      %c0_28 = arith.constant 0 : index
      %46 = vector.load %arg4[%c0_27, %c0_28] : memref<1x32xf32, #tpu.memory_space<vmem>>, vector<1x32xf32>
      %47 = vector.broadcast %46 : vector<1x32xf32> to vector<16x32xf32>
      %48 = arith.addf %45, %47 : vector<16x32xf32>
      %49 = arith.truncf %48 : vector<16x32xf32> to vector<16x32xbf16>
      %c0_29 = arith.constant 0 : index
      %c0_30 = arith.constant 0 : index
      %50 = vector.load %arg10[%c0_29, %c0_30] : memref<16x32xbf16, #tpu.memory_space<vmem>>, vector<16x32xbf16>
      tpu.vector_store %arg10[%c0_29, %c0_30], %49 {strides = array<i32>} : memref<16x32xbf16, #tpu.memory_space<vmem>>, vector<16x32xbf16>,
      %cst_31 = arith.constant 0.000000e+00 : f32
      %51 = vector.broadcast %cst_31 : f32 to vector<16x32xf32>
      %c0_32 = arith.constant 0 : index
      %c0_33 = arith.constant 0 : index
      %52 = vector.load %arg11[%c0_32, %c0_33] : memref<16x32xf32, #tpu.memory_space<vmem>>, vector<16x32xf32>
      tpu.vector_store %arg11[%c0_32, %c0_33], %51 {strides = array<i32>} : memref<16x32xf32, #tpu.memory_space<vmem>>, vector<16x32xf32>,
    } else {
    }
    %c0 = arith.constant 0 : index
    %c0_1 = arith.constant 0 : index
    %3 = vector.load %arg10[%c0, %c0_1] : memref<16x32xbf16, #tpu.memory_space<vmem>>, vector<16x32xbf16>
    %c0_2 = arith.constant 0 : index
    %c0_3 = arith.constant 0 : index
    %4 = vector.load %arg5[%c0_2, %c0_3] : memref<32x64xbf16, #tpu.memory_space<vmem>>, vector<32x64xbf16>
    %cst = arith.constant dense<0.000000e+00> : vector<16x64xf32>
    %5 = tpu.matmul %3, %4, %cst {dimension_numbers = #tpu.dot_dimension_numbers<[1], [0], [0], [1], [0, 0, 1, 1], [], []>} : vector<16x32xbf16>, vector<32x64xbf16>, vector<16x64xf32> -> vector<16x64xf32>
    %c0_4 = arith.constant 0 : index
    %c0_5 = arith.constant 0 : index
    %6 = vector.load %arg6[%c0_4, %c0_5] : memref<1x64xf32, #tpu.memory_space<vmem>>, vector<1x64xf32>
    %7 = vector.broadcast %6 : vector<1x64xf32> to vector<16x64xf32>
    %8 = arith.addf %5, %7 : vector<16x64xf32>
    %cst_6 = arith.constant 5.000000e-01 : f32
    %9 = vector.broadcast %cst_6 : f32 to vector<16x64xf32>
    %10 = arith.mulf %9, %8 : vector<16x64xf32>
    %cst_7 = arith.constant 0.707106769 : f32
    %11 = vector.broadcast %cst_7 : f32 to vector<16x64xf32>
    %12 = arith.mulf %8, %11 : vector<16x64xf32>
    %13 = math.erf %12 : vector<16x64xf32>
    %cst_8 = arith.constant 1.000000e+00 : f32
    %14 = vector.broadcast %cst_8 : f32 to vector<16x64xf32>
    %15 = arith.addf %14, %13 : vector<16x64xf32>
    %16 = arith.mulf %10, %15 : vector<16x64xf32>
    %c0_9 = arith.constant 0 : index
    %c0_10 = arith.constant 0 : index
    %17 = vector.load %arg11[%c0_9, %c0_10] : memref<16x32xf32, #tpu.memory_space<vmem>>, vector<16x32xf32>
    %18 = arith.truncf %16 : vector<16x64xf32> to vector<16x64xbf16>
    %c0_11 = arith.constant 0 : index
    %c0_12 = arith.constant 0 : index
    %19 = vector.load %arg7[%c0_11, %c0_12] : memref<64x32xbf16, #tpu.memory_space<vmem>>, vector<64x32xbf16>
    %cst_13 = arith.constant dense<0.000000e+00> : vector<16x32xf32>
    %20 = tpu.matmul %18, %19, %cst_13 {dimension_numbers = #tpu.dot_dimension_numbers<[1], [0], [0], [1], [0, 0, 1, 1], [], []>} : vector<16x64xbf16>, vector<64x32xbf16>, vector<16x32xf32> -> vector<16x32xf32>
    %21 = arith.addf %17, %20 : vector<16x32xf32>
    %c0_14 = arith.constant 0 : index
    %c0_15 = arith.constant 0 : index
    %22 = vector.load %arg11[%c0_14, %c0_15] : memref<16x32xf32, #tpu.memory_space<vmem>>, vector<16x32xf32>
    tpu.vector_store %arg11[%c0_14, %c0_15], %21 {strides = array<i32>} : memref<16x32xf32, #tpu.memory_space<vmem>>, vector<16x32xf32>,
    %c0_i32_16 = arith.constant 0 : i32
    %23 = arith.cmpi eq, %arg1, %c0_i32_16 : i32
    %24 = arith.extui %23 : i1 to i32
    %c0_i32_17 = arith.constant 0 : i32
    %25 = arith.cmpi ne, %24, %c0_i32_17 : i32
    scf.if %25 {
      %c0_18 = arith.constant 0 : index
      %c0_19 = arith.constant 0 : index
      %26 = vector.load %arg11[%c0_18, %c0_19] : memref<16x32xf32, #tpu.memory_space<vmem>>, vector<16x32xf32>
      %c0_20 = arith.constant 0 : index
      %c0_21 = arith.constant 0 : index
      %27 = vector.load %arg8[%c0_20, %c0_21] : memref<1x32xf32, #tpu.memory_space<vmem>>, vector<1x32xf32>
      %28 = vector.broadcast %27 : vector<1x32xf32> to vector<16x32xf32>
      %29 = arith.addf %26, %28 : vector<16x32xf32>
      %c0_22 = arith.constant 0 : index
      %c0_23 = arith.constant 0 : index
      %30 = vector.load %arg9[%c0_22, %c0_23] : memref<16x32xf32, #tpu.memory_space<vmem>>, vector<16x32xf32>
      tpu.vector_store %arg9[%c0_22, %c0_23], %29 {strides = array<i32>} : memref<16x32xf32, #tpu.memory_space<vmem>>, vector<16x32xf32>,
    } else {
    }
    return
  }
  func.func @transform_0(%arg0: i32, %arg1: i32) -> (i32, i32) {
    %c0_i32 = arith.constant 0 : i32
    %c0_i32_0 = arith.constant 0 : i32
    return %arg0, %c0_i32 : i32, i32
  }
  func.func @transform_1(%arg0: i32, %arg1: i32) -> (i32, i32) {
    %c0_i32 = arith.constant 0 : i32
    %c0_i32_0 = arith.constant 0 : i32
    %c0_i32_1 = arith.constant 0 : i32
    return %c0_i32, %c0_i32_0 : i32, i32
  }
  func.func @transform_2(%arg0: i32, %arg1: i32) -> (i32, i32) {
    %c0_i32 = arith.constant 0 : i32
    %c0_i32_0 = arith.constant 0 : i32
    %c0_i32_1 = arith.constant 0 : i32
    return %c0_i32, %c0_i32_0 : i32, i32
  }
  func.func @transform_3(%arg0: i32, %arg1: i32) -> (i32, i32) {
    %c0_i32 = arith.constant 0 : i32
    %c0_i32_0 = arith.constant 0 : i32
    return %c0_i32, %arg1 : i32, i32
  }
  func.func @transform_4(%arg0: i32, %arg1: i32) -> (i32, i32) {
    %c0_i32 = arith.constant 0 : i32
    %c0_i32_0 = arith.constant 0 : i32
    return %c0_i32, %arg1 : i32, i32
  }
  func.func @transform_5(%arg0: i32, %arg1: i32) -> (i32, i32) {
    %c0_i32 = arith.constant 0 : i32
    %c0_i32_0 = arith.constant 0 : i32
    return %arg1, %c0_i32 : i32, i32
  }
  func.func @transform_6(%arg0: i32, %arg1: i32) -> (i32, i32) {
    %c0_i32 = arith.constant 0 : i32
    %c0_i32_0 = arith.constant 0 : i32
    %c0_i32_1 = arith.constant 0 : i32
    return %c0_i32, %c0_i32_0 : i32, i32
  }
  func.func @transform_7(%arg0: i32, %arg1: i32) -> (i32, i32) {
    %c0_i32 = arith.constant 0 : i32
    %c0_i32_0 = arith.constant 0 : i32
    return %arg0, %c0_i32 : i32, i32
  }
}

</mosaic_0001>

<llo_original>
// kernel: tpu_custom_call.1
$region0: #{tpu_custom_call.1}
  #allocation0 [shape = 'u32[]', space=smem, size = 0x4, offset = 0x4, fixed_abs, tag = 'smem constant byte address 0x4 - core index']
  #allocation1 [shape = 'u32[144,128]{1,0:T(1,128)}', space=vmem, size = 0x12000, scoped, tag = 'internal scratch']
  #allocation2 [shape = 'bf16[16,32]{1,0:T(8,128)(2,1)}', space=vmem, size = 0x1000, scoped, tag = 'scratch operand']
  #allocation3 [shape = 'f32[16,32]{1,0:T(8,128)}', space=vmem, size = 0x2000, scoped, tag = 'scratch operand']
  %s0 = inlined_call_operand.vmem [shape: f32[16,32], index: 0, kind: input, shape index: {}]
  %s1 = inlined_call_operand.vmem [shape: f32[1,32], index: 1, kind: input, shape index: {}]
  %s2 = inlined_call_operand.vmem [shape: f32[1,32], index: 2, kind: input, shape index: {}]
  %s3 = inlined_call_operand.vmem [shape: bf16[32,64], index: 3, kind: input, shape index: {}]
  %s4 = inlined_call_operand.vmem [shape: f32[1,64], index: 4, kind: input, shape index: {}]
  %s5 = inlined_call_operand.vmem [shape: bf16[64,32], index: 5, kind: input, shape index: {}]
  %s6 = inlined_call_operand.vmem [shape: f32[1,32], index: 6, kind: input, shape index: {}]
  %s7 = inlined_call_operand.hbm [shape: f32[16,32], index: 7, kind: output, shape index: {}]
  %s8 = sld [smem:[#allocation0]]
  $region46: #{tpu_custom_call.1} parent=0
    _
  %s10 = ssub.s32 1, %s8
  %s11 = scalar_select 0, %s10, %s8
  $region1: #{tpu_custom_call.1} parent=0
    #allocation4 [shape = 'u8[8192]{0}', space=vmem, size = 0x2000, scoped, tag = 'output window, operand 0, single buffered']
    #allocation5 [shape = 's32[1]{0}', space=sflag, size = 0x4, scoped, tag = 'scoped memory for tpu_custom_call.1']
    %12 = vsyncpa [#allocation5], 0
    // Predicated region
    $region2: #{tpu_custom_call.1} parent=1 // pred_check
      _
    $region3: #{tpu_custom_call.1} parent=1 // pred_check_branch
      %14 = sbr.rel (0) target = $region5
    $region4: #{tpu_custom_call.1} parent=1 // pred_region
      _
    $region5: #{tpu_custom_call.1} parent=1 // pred_fallthru
      _
    // Predicated region
    $region6: #{tpu_custom_call.1} parent=1 // pred_check
      _
    $region7: #{tpu_custom_call.1} parent=1 // pred_check_branch
      %16 = sbr.rel (0) target = $region9
    $region8: #{tpu_custom_call.1} parent=1 // pred_region
      _
    $region9: #{tpu_custom_call.1} parent=1 // pred_fallthru
      _
    // Predicated region
    $region10: #{tpu_custom_call.1} parent=1 // pred_check
      _
    $region11: #{tpu_custom_call.1} parent=1 // pred_check_branch
      %18 = sbr.rel (0) target = $region13
    $region12: #{tpu_custom_call.1} parent=1 // pred_region
      _
    $region13: #{tpu_custom_call.1} parent=1 // pred_fallthru
      _
    // Predicated region
    $region14: #{tpu_custom_call.1} parent=1 // pred_check
      _
    $region15: #{tpu_custom_call.1} parent=1 // pred_check_branch
      %20 = sbr.rel (0) target = $region17
    $region16: #{tpu_custom_call.1} parent=1 // pred_region
      _
    $region17: #{tpu_custom_call.1} parent=1 // pred_fallthru
      _
    // Predicated region
    $region18: #{tpu_custom_call.1} parent=1 // pred_check
      _
    $region19: #{tpu_custom_call.1} parent=1 // pred_check_branch
      %22 = sbr.rel (0) target = $region21
    $region20: #{tpu_custom_call.1} parent=1 // pred_region
      _
    $region21: #{tpu_custom_call.1} parent=1 // pred_fallthru
      _
    // Predicated region
    $region22: #{tpu_custom_call.1} parent=1 // pred_check
      _
    $region23: #{tpu_custom_call.1} parent=1 // pred_check_branch
      %24 = sbr.rel (0) target = $region25
    $region24: #{tpu_custom_call.1} parent=1 // pred_region
      _
    $region25: #{tpu_custom_call.1} parent=1 // pred_fallthru
      _
    // Predicated region
    $region26: #{tpu_custom_call.1} parent=1 // pred_check
      _
    $region27: #{tpu_custom_call.1} parent=1 // pred_check_branch
      %26 = sbr.rel (0) target = $region29
    $region28: #{tpu_custom_call.1} parent=1 // pred_region
      _
    $region29: #{tpu_custom_call.1} parent=1 // pred_fallthru
      _
    %p28 = scmp.eq.s32.totalorder 0, 0
    // Predicated region
    $region30: #{tpu_custom_call.1} parent=1 // pred_check
      %p29 = pneg %p28
    $region31: #{tpu_custom_call.1} parent=1 // pred_check_branch
      %31 = sbr.rel (%p29) target = $region33
    $region32: #{tpu_custom_call.1} parent=1 // pred_region
      %v32 = vld [vmem:[%s0] sm:$0xff]
      %v33 = vld [vmem:[%s0 + $0x8] sm:$0xff]
      %vm34 = vcmask 261120
      %v35 = vsel %vm34, %v32, 0.0
      %36 = vadd.xlane.f32.xlu0 %v35
      %v37 = vpop.xlane.xlu0 %36
      %v38 = vsel %vm34, %v33, 0.0
      %39 = vadd.xlane.f32.xlu0 %v38
      %v40 = vpop.xlane.xlu0 %39
      %v41 = vrcp.pop 32.0
      %v42 = vmul.f32 %v37, %v41
      %v43 = vmul.f32 %v40, %v41
      %v44 = vsub.f32 %v32, %v42
      %v45 = vsub.f32 %v33, %v43
      %v46 = vmul.f32 %v44, %v44
      %v47 = vmul.f32 %v45, %v45
      %v48 = vsel %vm34, %v46, 0.0
      %49 = vadd.xlane.f32.xlu0 %v48
      %v50 = vpop.xlane.xlu0 %49
      %v51 = vsel %vm34, %v47, 0.0
      %52 = vadd.xlane.f32.xlu0 %v51
      %v53 = vpop.xlane.xlu0 %52
      %v54 = vmul.f32 %v50, %v41
      %v55 = vmul.f32 %v53, %v41
      %v56 = vadd.f32 %v54, 1e-05
      %v57 = vadd.f32 %v55, 1e-05
      %v58 = vrsqrt.pop %v56
      %v59 = vrsqrt.pop %v57
      %v60 = vmul.f32 %v44, %v58
      %v61 = vmul.f32 %v45, %v59
      %v62 = vld [vmem:[%s1] sm:$0x1]
      %v64 = vlaneseq
      %v65 = vshrl.u32 %v64, 7
      %v66 = vsub.s32 0, %v65
      %v67 = vrot.slane %v62, %v66
      %v69 = vmul.f32 %v60, %v67
      %v70 = vmul.f32 %v61, %v67
      %v71 = vld [vmem:[%s2] sm:$0x1]
      %v73 = vlaneseq
      %v74 = vshrl.u32 %v73, 7
      %v75 = vsub.s32 0, %v74
      %v76 = vrot.slane %v71, %v75
      %v78 = vadd.f32 %v69, %v76
      %v79 = vadd.f32 %v70, %v76
      %v80 = vpack.c.bf16 %v79, %v78
      %v82 = vunpack.c.l.b16 %v80
      %v83 = vunpack.c.h.b16 %v80
      %v84 = vpack.c.b16 %v82, %v82
      %v85 = vpack.c.b16 %v83, %v83
      %vm88 = vcmask 257024
      %89 = vst.msk [vmem:[#allocation2] sm:$0xf] %vm88, %v84
      %90 = vst.msk [vmem:[#allocation2 + $0x4] sm:$0xf] %vm88, %v85
      %91 = vst.msk [vmem:[#allocation3] sm:$0xff] %vm34, 0.0
      %92 = vst.msk [vmem:[#allocation3 + $0x8] sm:$0xff] %vm34, 0.0
    $region33: #{tpu_custom_call.1} parent=1 // pred_fallthru
      _
    %v93 = vld [vmem:[#allocation2] sm:$0xf]
    %v94 = vld [vmem:[#allocation2 + $0x4] sm:$0xf]
    %v95 = vld [vmem:[%s3] sm:$0xf]
    %v96 = vld [vmem:[%s3 + $0x4] sm:$0xf]
    %v97 = vld [vmem:[%s3 + $0x8] sm:$0xf]
    %v98 = vld [vmem:[%s3 + $0xc] sm:$0xf]
    %v99 = vld [vmem:[%s4] sm:$0x1]
    %v101 = vlaneseq
    %v102 = vshrl.u32 %v101, 7
    %v103 = vsub.s32 0, %v102
    %v104 = vrot.slane %v99, %v103
    %v108 = vunpack.c.l.b16 %v93
    %v109 = vunpack.c.l.b16 %v94
    %v110 = vpack.c.b16 %v109, %v108
    %v115 = vunpack.c.l.b16 %v95
    %v116 = vunpack.c.l.b16 %v96
    %v117 = vunpack.c.l.b16 %v97
    %v118 = vunpack.c.l.b16 %v98
    %v119 = vpack.c.b16 %v116, %v115
    %v120 = vpack.c.b16 %v118, %v117
    %vm123 = vcmask 261120
    %v125 = vsel %vm123, %v110, 0
    %127 = vmatprep.subr.bf16.mxu0 0
    %128 = vmatpush1.bf16.msra.mxu0 0
    %129 = vmatprep.subr.bf16.mxu0 0
    %130 = vmatpush1.bf16.msra.mxu0 0
    %131 = vmatprep.subr.bf16.mxu0 0
    %132 = vmatpush1.bf16.msra.mxu0 0
    %133 = vmatprep.subr.bf16.mxu0 0
    %134 = vmatpush1.bf16.msra.mxu0 0
    %135 = vmatprep.subr.bf16.mxu0 0
    %136 = vmatpush1.bf16.msra.mxu0 0
    %137 = vmatprep.subr.bf16.mxu0 0
    %138 = vmatpush1.bf16.msra.mxu0 0
    %139 = vmatprep.subr.bf16.mxu0 0
    %140 = vmatpush1.bf16.msra.mxu0 %v120
    %141 = vmatprep.subr.bf16.mxu0 0
    %142 = vmatpush1.bf16.msra.mxu0 %v119
    %143 = vmatprep.subr.bf16.mxu0 0
    %144 = vmatpush2.bf16.msra.mxu0 0
    %145 = vmatprep.subr.bf16.mxu0 0
    %146 = vmatpush2.bf16.msra.mxu0 0
    %147 = vmatprep.subr.bf16.mxu0 0
    %148 = vmatpush2.bf16.msra.mxu0 0
    %149 = vmatprep.subr.bf16.mxu0 0
    %150 = vmatpush2.bf16.msra.mxu0 0
    %151 = vmatprep.subr.bf16.mxu0 0
    %152 = vmatpush2.bf16.msra.mxu0 0
    %153 = vmatprep.subr.bf16.mxu0 0
    %154 = vmatpush2.bf16.msra.mxu0 0
    %155 = vmatprep.subr.bf16.mxu0 0
    %156 = vmatpush2.bf16.msra.mxu0 0
    %157 = vmatprep.subr.bf16.mxu0 0
    %158 = vmatpush2.bf16.msra.mxu0 0
    %159 = vmatprep.mubr.bf16.mxu0 0
    %160 = vmatmul.mubr.bf16.gmra.mxu0 %v125
    %v161 = vpop.f32.mrf.mxu0
    %v162 = vadd.f32 %v104, %v161
    %v163 = vpop.f32.mrf.mxu0
    %v164 = vpop.f32.mrf.mxu0
    %v165 = vadd.f32 %v104, %v164
    %v166 = vpop.f32.mrf.mxu0
    %167 = vdwg.mxu0
    %v168 = vmul.f32 %v162, 0.5
    %v169 = vmul.f32 %v165, 0.5
    %v170 = vmul.f32 %v162, 0.70710677
    %v171 = vmul.f32 %v165, 0.70710677
    %v172 = verf.f32.pop %v170
    %v173 = verf.f32.pop %v171
    %v174 = vadd.f32 %v172, 1.0
    %v175 = vadd.f32 %v173, 1.0
    %v176 = vmul.f32 %v168, %v174
    %v177 = vmul.f32 %v169, %v175
    %v178 = vld [vmem:[#allocation3] sm:$0xff]
    %v179 = vld [vmem:[#allocation3 + $0x8] sm:$0xff]
    %v180 = vpack.c.bf16 %v177, %v176
    %v181 = vld [vmem:[%s5] sm:$0xf]
    %v182 = vld [vmem:[%s5 + $0x4] sm:$0xf]
    %v183 = vld [vmem:[%s5 + $0x8] sm:$0xf]
    %v184 = vld [vmem:[%s5 + $0xc] sm:$0xf]
    %v185 = vld [vmem:[%s5 + $0x10] sm:$0xf]
    %v186 = vld [vmem:[%s5 + $0x14] sm:$0xf]
    %v187 = vld [vmem:[%s5 + $0x18] sm:$0xf]
    %v188 = vld [vmem:[%s5 + $0x1c] sm:$0xf]
    %v197 = vunpack.c.l.b16 %v181
    %v198 = vunpack.c.l.b16 %v182
    %v199 = vunpack.c.l.b16 %v183
    %v200 = vunpack.c.l.b16 %v184
    %v201 = vunpack.c.l.b16 %v185
    %v202 = vunpack.c.l.b16 %v186
    %v203 = vunpack.c.l.b16 %v187
    %v204 = vunpack.c.l.b16 %v188
    %v205 = vpack.c.b16 %v198, %v197
    %v206 = vpack.c.b16 %v200, %v199
    %v207 = vpack.c.b16 %v202, %v201
    %v208 = vpack.c.b16 %v204, %v203
    %vm213 = vcmask 523264
    %v215 = vsel %vm213, %v180, 0
    %217 = vmatprep.subr.bf16.mxu0 0
    %218 = vmatpush1.bf16.msra.mxu0 0
    %219 = vmatprep.subr.bf16.mxu0 0
    %220 = vmatpush1.bf16.msra.mxu0 0
    %221 = vmatprep.subr.bf16.mxu0 0
    %222 = vmatpush1.bf16.msra.mxu0 0
    %223 = vmatprep.subr.bf16.mxu0 0
    %224 = vmatpush1.bf16.msra.mxu0 0
    %225 = vmatprep.subr.bf16.mxu0 0
    %226 = vmatpush1.bf16.msra.mxu0 %v208
    %227 = vmatprep.subr.bf16.mxu0 0
    %228 = vmatpush1.bf16.msra.mxu0 %v207
    %229 = vmatprep.subr.bf16.mxu0 0
    %230 = vmatpush1.bf16.msra.mxu0 %v206
    %231 = vmatprep.subr.bf16.mxu0 0
    %232 = vmatpush1.bf16.msra.mxu0 %v205
    %233 = vmatprep.subr.bf16.mxu0 0
    %234 = vmatpush2.bf16.msra.mxu0 0
    %235 = vmatprep.subr.bf16.mxu0 0
    %236 = vmatpush2.bf16.msra.mxu0 0
    %237 = vmatprep.subr.bf16.mxu0 0
    %238 = vmatpush2.bf16.msra.mxu0 0
    %239 = vmatprep.subr.bf16.mxu0 0
    %240 = vmatpush2.bf16.msra.mxu0 0
    %241 = vmatprep.subr.bf16.mxu0 0
    %242 = vmatpush2.bf16.msra.mxu0 0
    %243 = vmatprep.subr.bf16.mxu0 0
    %244 = vmatpush2.bf16.msra.mxu0 0
    %245 = vmatprep.subr.bf16.mxu0 0
    %246 = vmatpush2.bf16.msra.mxu0 0
    %247 = vmatprep.subr.bf16.mxu0 0
    %248 = vmatpush2.bf16.msra.mxu0 0
    %249 = vmatprep.mubr.bf16.mxu0 0
    %250 = vmatmul.mubr.bf16.gmra.mxu0 %v215
    %v251 = vpop.f32.mrf.mxu0
    %v252 = vadd.f32 0.0, %v251
    %v253 = vpop.f32.mrf.mxu0
    %v254 = vpop.f32.mrf.mxu0
    %v255 = vadd.f32 0.0, %v254
    %v256 = vpop.f32.mrf.mxu0
    %257 = vdwg.mxu0
    %v258 = vadd.f32 %v178, %v252
    %v259 = vadd.f32 %v179, %v255
    %260 = vst.msk [vmem:[#allocation3] sm:$0xff] %vm123, %v258
    %261 = vst.msk [vmem:[#allocation3 + $0x8] sm:$0xff] %vm123, %v259
    // Predicated region
    $region34: #{tpu_custom_call.1} parent=1 // pred_check
      %p262 = pneg %p28
    $region35: #{tpu_custom_call.1} parent=1 // pred_check_branch
      %264 = sbr.rel (%p262) target = $region37
    $region36: #{tpu_custom_call.1} parent=1 // pred_region
      %v265 = vld [vmem:[#allocation3] sm:$0xff]
      %v266 = vld [vmem:[#allocation3 + $0x8] sm:$0xff]
      %v267 = vld [vmem:[%s6] sm:$0x1]
      %v269 = vlaneseq
      %v270 = vshrl.u32 %v269, 7
      %v271 = vsub.s32 0, %v270
      %v272 = vrot.slane %v267, %v271
      %v274 = vadd.f32 %v265, %v272
      %v275 = vadd.f32 %v266, %v272
      %276 = vst.msk [vmem:[#allocation4] sm:$0xff] %vm123, %v274
      %277 = vst.msk [vmem:[#allocation4 + $0x8] sm:$0xff] %vm123, %v275
    $region37: #{tpu_custom_call.1} parent=1 // pred_fallthru
      _
    // Predicated region
    $region38: #{tpu_custom_call.1} parent=1 // pred_check
      _
    $region39: #{tpu_custom_call.1} parent=1 // pred_check_branch
      %279 = sbr.rel (0) target = $region41
    $region40: #{tpu_custom_call.1} parent=1 // pred_region
      %s281 = ssub.s32 256, 256
      %282 = vsyncadd [#allocation5], %s281
      %s283 = sshll.u32 [#allocation4], 4
      %s284 = int_to_ptr.vmem [resolvable:$true] %s283
      %289 = dma.vmem_to_hbm [thread:$0]  %s284, 256, %s7, [#allocation5], 128, 128, 8
    $region41: #{tpu_custom_call.1} parent=1 // pred_fallthru
      _
    // Predicated region
    $region42: #{tpu_custom_call.1} parent=1 // pred_check
      _
    $region43: #{tpu_custom_call.1} parent=1 // pred_check_branch
      %291 = sbr.rel (0) target = $region45
    $region44: #{tpu_custom_call.1} parent=1 // pred_region
      %292 = dma.done [#allocation5], 256
    $region45: #{tpu_custom_call.1} parent=1 // pred_fallthru
      _
    %293 = vsyncpa [#allocation5], 1

</llo_original>
